<compile_context>
chip_gen: v5e
topology: v5e:2x2
jax: 0.10.0
libtpu: 0.0.40
codegen_flags: <defaults>
</compile_context>

<pallas_src>
import numpy as np
import jax
import jax.numpy as jnp
from jax.experimental import pallas as pl
from jax.experimental.pallas import tpu as pltpu


# ----------------------------- Pallas kernel ------------------------------ #
def conv_bias_relu_kernel(w_ref, p_ref, o_ref):
    # w_ref: (Cout, K_pad)      -- conv weights with bias folded in as a column
    # p_ref: (1, K_pad, P_pad)  -- im2col patches for ONE image (ones row for bias)
    # o_ref: (1, Cout, P_pad)
    acc = jnp.dot(w_ref[...], p_ref[0], preferred_element_type=jnp.float32)
    o_ref[0] = jnp.maximum(acc, 0.0).astype(o_ref.dtype)


# ------------------------------- glue (JAX) -------------------------------- #
def _round_up(x, m):
    return -(-x // m) * m


def batched_conv3x3_relu(x_nchw, weight_oihw, bias):
    """3x3 stride-1 'SAME' conv + ReLU, batched over images of one shape.

    (N, Cin, H, W) -> (N, Cout, H, W).  One pallas_call, grid over images.
    """
    n, cin, H, W = x_nchw.shape
    cout = weight_oihw.shape[0]
    P = H * W
    K = 9 * cin + 1                      # +1: ones row / bias column
    K_pad = _round_up(K, 8)              # clean (8,128) sublane tile for contraction dim
    P_pad = _round_up(P, 256)            # full 256-wide MXU N pass; multiple of 128 for v5e

    # im2col directly in the transposed (K, P) layout, K ordered (c, kh, kw) so
    # it matches weight.reshape(Cout, Cin*9).  Pure glue; fuses under jit.
    xp = jnp.pad(x_nchw, ((0, 0), (0, 0), (1, 1), (1, 1)))       # (N, Cin, H+2, W+2)
    cols = [xp[:, :, kh:kh + H, kw:kw + W].reshape(n, cin, P)
            for kh in range(3) for kw in range(3)]
    patches = jnp.stack(cols, axis=2).reshape(n, 9 * cin, P)     # (N, 9*Cin, H*W)
    ones = jnp.ones((n, 1, P), jnp.float32)                      # bias row
    patches = jnp.concatenate([patches, ones], axis=1)           # (N, K, P)
    patches = jnp.pad(patches, ((0, 0), (0, K_pad - K), (0, P_pad - P)))

    w_mat = weight_oihw.reshape(cout, 9 * cin)                   # (Cout, 9*Cin)
    w_mat = jnp.concatenate([w_mat, bias.reshape(cout, 1)], axis=1)  # bias column
    w_mat = jnp.pad(w_mat, ((0, 0), (0, K_pad - K)))             # (Cout, K_pad)

    # TODO(synk): for a ResNet-scale extractor, cast patches/w_mat to bf16 (keep
    # f32 accumulation), move im2col in-kernel (DMA the padded input once and
    # accumulate 9 shifted dots / pltpu.roll) to avoid the 9x HBM inflation of a
    # materialized patch matrix, and re-derive K/P tiling + vmem_limit_bytes
    # against v7x's 64 MiB VMEM.  Irrelevant at these toy sizes.
    out = pl.pallas_call(
        conv_bias_relu_kernel,
        out_shape=jax.ShapeDtypeStruct((n, cout, P_pad), jnp.float32),
        grid=(n,),
        in_specs=[
            pl.BlockSpec((cout, K_pad), lambda i: (0, 0)),
            pl.BlockSpec((1, K_pad, P_pad), lambda i: (i, 0, 0)),
        ],
        out_specs=pl.BlockSpec((1, cout, P_pad), lambda i: (i, 0, 0)),
        compiler_params=pltpu.CompilerParams(
            dimension_semantics=("parallel",)),       # megacore split on v7x
    )(w_mat, patches)

    return out[:, :, :P].reshape(n, cout, H, W)


def make_feature_extractor(weight, bias):
    """Returns a jitted batched extractor: (N, Cin, H, W) -> (N, Cout, H, W)."""

    @jax.jit
    def batched_forward(x_nchw):
        # One compile per unique (N, Cin, H, W); glue ops fuse with the pallas_call.
        return batched_conv3x3_relu(x_nchw, weight, bias)

    return batched_forward


# ----------------------- LabelFeatureExtractor port ------------------------ #
class LabelFeatureExtractor:
    """Runs the feature extractor on every class image in a list.

    Forward semantics match the PyTorch module (one (1, Cout, H, W) map per
    image, in input order); same-shape images are batched into a single
    pallas_call for performance.
    """

    def __init__(self, feature_extractor):
        self.net_class_features = feature_extractor

    def __call__(self, class_image_list):
        # Bucket by shape so every bucket is one stacked pallas_call.
        buckets = {}
        for idx, img in enumerate(class_image_list):
            buckets.setdefault(tuple(img.shape), []).append(idx)

        results = [None] * len(class_image_list)
        for _, idxs in buckets.items():
            stacked = jnp.stack([class_image_list[i] for i in idxs], axis=0)
            fmaps = self.net_class_features(stacked)          # (Nb, Cout, H, W)
            for j, i in enumerate(idxs):
                results[i] = fmaps[j:j + 1]                   # keep unsqueeze(0) semantics
        return results

    # TODO(synk): freeze_bn / freeze_blocks are training-time parameter-freezing
    # utilities with no forward-pass compute; nothing to lower to Pallas.
    def freeze_bn(self):
        pass

    def freeze_blocks(self, num_blocks=0):
        pass


# --------------------------------- main ------------------------------------ #
if __name__ == "__main__":
    CIN, COUT = 3, 32
    key = jax.random.PRNGKey(0)
    k_w, k_b, k_x1, k_x2, k_x3 = jax.random.split(key, 5)

    # Deterministic synthetic feature-extractor parameters (Conv2d(CIN, COUT, 3, padding=1))
    weight = jax.random.normal(k_w, (COUT, CIN, 3, 3), jnp.float32) * 0.1
    bias = jax.random.normal(k_b, (COUT,), jnp.float32) * 0.1

    extractor = LabelFeatureExtractor(make_feature_extractor(weight, bias))

    # Class images of different spatial sizes (CHW), as the module expects.
    # The two 16x16 images land in the same bucket -> one pallas_call for both.
    class_image_list = [
        jax.random.normal(k_x1, (CIN, 16, 16), jnp.float32),
        jax.random.normal(k_x2, (CIN, 24, 24), jnp.float32),
        jax.random.normal(k_x3, (CIN, 16, 16), jnp.float32),
    ]

    outs = extractor(class_image_list)
    outs = [jax.block_until_ready(o) for o in outs]

    # Sanity check against XLA conv reference.
    ok = True
    for img, o in zip(class_image_list, outs):
        ref = jax.lax.conv_general_dilated(
            img[None], weight, window_strides=(1, 1), padding="SAME",
            dimension_numbers=("NCHW", "OIHW", "NCHW"))
        ref = jnp.maximum(ref + bias.reshape(1, -1, 1, 1), 0.0)
        ok &= bool(np.allclose(np.asarray(o), np.asarray(ref), rtol=1e-4, atol=1e-4))
        assert o.shape == (1, COUT, img.shape[1], img.shape[2])

    assert ok, "Pallas conv output mismatch vs reference"
    print("KERNEL_OK")
</pallas_src>

<mosaic_0001>
module attributes {stable_mosaic.version = 11 : i64} {
  func.func @conv_bias_relu_kernel(%arg0: i32, %arg1: memref<32x32xf32, #tpu.memory_space<vmem>>, %arg2: memref<1x32x256xf32, #tpu.memory_space<vmem>>, %arg3: memref<1x32x256xf32, #tpu.memory_space<vmem>>) attributes {dimension_semantics = [#tpu.dimension_semantics<parallel>], iteration_bounds = array<i64: 2>, scalar_prefetch = 0 : i64, scratch_operands = 0 : i64, tpu.core_type = #tpu.core_type<tc>, window_params = [{pipeline_mode = #tpu.pipeline_mode<synchronous>, transform_indices = @transform_0, window_bounds = array<i64: 32, 32>}, {transform_indices = @transform_1, window_bounds = array<i64: 1, 32, 256>}, {transform_indices = @transform_2, window_bounds = array<i64: 1, 32, 256>}]} {
    %c0 = arith.constant 0 : index
    %c0_0 = arith.constant 0 : index
    %0 = vector.load %arg1[%c0, %c0_0] : memref<32x32xf32, #tpu.memory_space<vmem>>, vector<32x32xf32>
    %c0_1 = arith.constant 0 : index
    %c0_2 = arith.constant 0 : index
    %c0_3 = arith.constant 0 : index
    %1 = vector.load %arg2[%c0_1, %c0_2, %c0_3] : memref<1x32x256xf32, #tpu.memory_space<vmem>>, vector<1x32x256xf32>
    %2 = vector.shape_cast %1 : vector<1x32x256xf32> to vector<32x256xf32>
    %cst = arith.constant dense<0.000000e+00> : vector<32x256xf32>
    %3 = tpu.matmul %0, %2, %cst {dimension_numbers = #tpu.dot_dimension_numbers<[1], [0], [0], [1], [0, 0, 1, 1], [], []>} : vector<32x32xf32>, vector<32x256xf32>, vector<32x256xf32> -> vector<32x256xf32>
    %cst_4 = arith.constant 0.000000e+00 : f32
    %4 = vector.broadcast %cst_4 : f32 to vector<32x256xf32>
    %5 = arith.maximumf %3, %4 : vector<32x256xf32>
    %c0_5 = arith.constant 0 : index
    %c0_6 = arith.constant 0 : index
    %c0_7 = arith.constant 0 : index
    %6 = vector.load %arg3[%c0_5, %c0_6, %c0_7] : memref<1x32x256xf32, #tpu.memory_space<vmem>>, vector<1x32x256xf32>
    %7 = vector.shape_cast %6 : vector<1x32x256xf32> to vector<32x256xf32>
    %8 = vector.shape_cast %5 : vector<32x256xf32> to vector<1x32x256xf32>
    tpu.vector_store %arg3[%c0_5, %c0_6, %c0_7], %8 {strides = array<i32>} : memref<1x32x256xf32, #tpu.memory_space<vmem>>, vector<1x32x256xf32>,
    return
  }
  func.func @transform_0(%arg0: i32) -> (i32, i32) {
    %c0_i32 = arith.constant 0 : i32
    %c0_i32_0 = arith.constant 0 : i32
    %c0_i32_1 = arith.constant 0 : i32
    return %c0_i32, %c0_i32_0 : i32, i32
  }
  func.func @transform_1(%arg0: i32) -> (i32, i32, i32) {
    %c0_i32 = arith.constant 0 : i32
    %c0_i32_0 = arith.constant 0 : i32
    %c0_i32_1 = arith.constant 0 : i32
    return %arg0, %c0_i32, %c0_i32_0 : i32, i32, i32
  }
  func.func @transform_2(%arg0: i32) -> (i32, i32, i32) {
    %c0_i32 = arith.constant 0 : i32
    %c0_i32_0 = arith.constant 0 : i32
    %c0_i32_1 = arith.constant 0 : i32
    return %arg0, %c0_i32, %c0_i32_0 : i32, i32, i32
  }
}

</mosaic_0001>

<llo_original>
// kernel: batched_forward.1
$region0: #{batched_forward.1}
  #allocation0 [shape = 'u32[]', space=smem, size = 0x4, offset = 0x4, fixed_abs, tag = 'smem constant byte address 0x4 - core index']
  #allocation1 [shape = 'u32[72,128]{1,0:T(1,128)}', space=vmem, size = 0x9000, scoped, tag = 'internal scratch']
  %s0 = inlined_call_operand.vmem [shape: f32[32,32], index: 0, kind: input, shape index: {}]
  %s1 = inlined_call_operand.vmem [shape: f32[2,32,256], index: 1, kind: input, shape index: {}]
  %s2 = inlined_call_operand.vmem [shape: f32[2,32,256], index: 2, kind: output, shape index: {}]
  %s3 = sld [smem:[#allocation0]]
  $region41: #{batched_forward.1} parent=0
    _
  %s5 = ssub.s32 1, %s3
  %s6 = scalar_select 0, %s5, %s3
  loop: start=0, step=1, limit=4
  $region2: #{batched_forward.1} parent=0 // loop_pre_header
    _
  $region3: #{batched_forward.1} parent=0 // loop_header
    %s8 = sphi 0, %s12
    %p9 = scmp.ge.s32.totalorder %s8, 4
    %s16 = sphi 0, %s16
    %s18 = sphi 0, %s16
    %s19 = sphi 0, %s18
    %s33 = sphi 0, %s19
    %s39 = sphi 0, %s41
    %s42 = sphi 0, %s39
    %s43 = sphi 0, %s42
    %s59 = sphi 0, %s43
    %s65 = sphi 0, %s67
    %s68 = sphi 0, %s65
    %s69 = sphi 0, %s68
    %s85 = sphi 0, %s69
  $region4: #{batched_forward.1} parent=0 // loop_header_branch
    %11 = sbr.rel (%p9) target = $region8
  $region5: #{batched_forward.1} parent=0 // loop_body
    %s13 = ssub.s32 %s8, 1
    %s14 = ssub.s32 %s8, 2
    %s15 = sadd.s32 %s8, 1
    %s17 = sadd.s32 %s16, 1
    %p20 = scmp.eq.s32.totalorder %s8, 1
    %p21 = scmp.ne.s32.totalorder %s16, %s18
    %p22 = scmp.eq.s32.totalorder %s8, 0
    %p23 = por %p21, %p22
    %p24 = scmp.ne.s32.totalorder %s16, %s18
    %p25 = scmp.eq.s32.totalorder %s13, 1
    %p26 = por %p24, %p25
    %p27 = scmp.ne.s32.totalorder %s18, %s19
    %p28 = scmp.eq.s32.totalorder %s13, 0
    %p29 = por %p27, %p28
    %p30 = scmp.ne.s32.totalorder %s18, %s19
    %p31 = scmp.eq.s32.totalorder %s14, 1
    %p32 = por %p30, %p31
    %p34 = scmp.ne.s32.totalorder %s19, %s33
    %p35 = scmp.eq.s32.totalorder %s14, 0
    %p36 = por %p34, %p35
    %s37 = ssub.s32 %s8, %s15
    %p38 = scmp.eq.s32.totalorder %s37, 0
    %s40 = sadd.s32 %s39, 1
    %s41 = scalar_select %p38, %s39, %s40
    %p44 = pneg %p38
    %p45 = scmp.eq.s32.totalorder %s8, 1
    %p46 = por %p44, %p45
    %p47 = scmp.ne.s32.totalorder %s39, %s42
    %p48 = scmp.eq.s32.totalorder %s8, 0
    %p49 = por %p47, %p48
    %p50 = scmp.ne.s32.totalorder %s39, %s42
    %p51 = scmp.eq.s32.totalorder %s13, 1
    %p52 = por %p50, %p51
    %p53 = scmp.ne.s32.totalorder %s42, %s43
    %p54 = scmp.eq.s32.totalorder %s13, 0
    %p55 = por %p53, %p54
    %p56 = scmp.ne.s32.totalorder %s42, %s43
    %p57 = scmp.eq.s32.totalorder %s14, 1
    %p58 = por %p56, %p57
    %p60 = scmp.ne.s32.totalorder %s43, %s59
    %p61 = scmp.eq.s32.totalorder %s14, 0
    %p62 = por %p60, %p61
    %s63 = ssub.s32 %s8, %s15
    %p64 = scmp.eq.s32.totalorder %s63, 0
    %s66 = sadd.s32 %s65, 1
    %s67 = scalar_select %p64, %s65, %s66
    %p70 = pneg %p64
    %p71 = scmp.eq.s32.totalorder %s8, 1
    %p72 = por %p70, %p71
    %p73 = scmp.ne.s32.totalorder %s65, %s68
    %p74 = scmp.eq.s32.totalorder %s8, 0
    %p75 = por %p73, %p74
    %p76 = scmp.ne.s32.totalorder %s65, %s68
    %p77 = scmp.eq.s32.totalorder %s13, 1
    %p78 = por %p76, %p77
    %p79 = scmp.ne.s32.totalorder %s68, %s69
    %p80 = scmp.eq.s32.totalorder %s13, 0
    %p81 = por %p79, %p80
    %p82 = scmp.ne.s32.totalorder %s68, %s69
    %p83 = scmp.eq.s32.totalorder %s14, 1
    %p84 = por %p82, %p83
    %p86 = scmp.ne.s32.totalorder %s69, %s85
    %p87 = scmp.eq.s32.totalorder %s14, 0
    %p88 = por %p86, %p87
    %p89 = scmp.le.s32.totalorder 1, %s8
    %p90 = scmp.lt.s32.totalorder %s8, 3
    %p91 = pnand %p89, %p90
    %p92 = pneg %p91
    // Predicated region
    $region9: #{batched_forward.1} parent=5 // pred_check
      _
    $region10: #{batched_forward.1} parent=5 // pred_check_branch
      %94 = sbr.rel (%p91) target = $region12
    $region11: #{batched_forward.1} parent=5 // pred_region
      %s95 = ssub.s32 %s8, 1
      // Predicated region
      $region13: #{batched_forward.1} parent=11 // pred_check
        %p96 = pneg %p29
      $region14: #{batched_forward.1} parent=11 // pred_check_branch
        %98 = sbr.rel (%p96) target = $region16
      $region15: #{batched_forward.1} parent=11 // pred_region
        _
      $region16: #{batched_forward.1} parent=11 // pred_fallthru
        _
    $region12: #{batched_forward.1} parent=5 // pred_fallthru
      _
    %p99 = scmp.lt.s32.totalorder %s8, 2
    // Predicated region
    $region17: #{batched_forward.1} parent=5 // pred_check
      %p100 = pneg %p99
    $region18: #{batched_forward.1} parent=5 // pred_check_branch
      %102 = sbr.rel (%p100) target = $region20
    $region19: #{batched_forward.1} parent=5 // pred_region
      // Predicated region
      $region21: #{batched_forward.1} parent=19 // pred_check
        %p103 = pneg %p49
      $region22: #{batched_forward.1} parent=19 // pred_check_branch
        %105 = sbr.rel (%p103) target = $region24
      $region23: #{batched_forward.1} parent=19 // pred_region
        %p106 = scmp.lt.s32.totalorder %s8, 1
        %s107 = scalar_select %p106, %s8, 1
        %s108 = smul.addr %s107, 8
        %s109 = smul.addr %s108, 8
        %s110 = scalar_lea.vmem %s1, %s109
      $region24: #{batched_forward.1} parent=19 // pred_fallthru
        _
    $region20: #{batched_forward.1} parent=5 // pred_fallthru
      _
    %p111 = scmp.le.s32.totalorder 1, %s8
    %p112 = scmp.lt.s32.totalorder %s8, 3
    %p113 = pnand %p111, %p112
    %p114 = pneg %p113
    // Predicated region
    $region25: #{batched_forward.1} parent=5 // pred_check
      _
    $region26: #{batched_forward.1} parent=5 // pred_check_branch
      %116 = sbr.rel (%p113) target = $region28
    $region27: #{batched_forward.1} parent=5 // pred_region
      %s117 = ssub.s32 %s8, 1
      %p118 = pneg %p29
      %p119 = pneg %p26
      %p120 = scmp.lt.s32.totalorder %s13, 1
      %s121 = scalar_select %p120, %s13, 1
      %s122 = smul.addr %s121, 8
      %s123 = smul.addr %s122, 8
      %s124 = scalar_lea.vmem %s1, %s123
      %p125 = pneg %p55
      %p126 = pneg %p52
      %p127 = pneg %p81
      %p128 = pneg %p78
      %p129 = scmp.lt.s32.totalorder %s13, 1
      %s130 = scalar_select %p129, %s13, 1
      %s131 = smul.addr %s130, 8
      %s132 = smul.addr %s131, 8
      %s133 = scalar_lea.vmem %s2, %s132
      %p134 = scmp.lt.s32.totalorder %s13, 1
      %s135 = scalar_select %p134, %s13, 1
      %s136 = smul.addr %s135, 8
      %s137 = smul.addr %s136, 8
      %s138 = scalar_lea.vmem %s1, %s137
      %p139 = scmp.lt.s32.totalorder %s13, 1
      %s140 = scalar_select %p139, %s13, 1
      %s141 = smul.addr %s140, 8
      %s142 = smul.addr %s141, 8
      %s143 = scalar_lea.vmem %s2, %s142
      %v144 = vld [vmem:[%s0] sm:$0xff]
      %v145 = vld [vmem:[%s0 + $0x8] sm:$0xff]
      %v146 = vld [vmem:[%s0 + $0x10] sm:$0xff]
      %v147 = vld [vmem:[%s0 + $0x18] sm:$0xff]
      %v148 = vld [vmem:[%s138] sm:$0xff]
      %v149 = vld [vmem:[%s138 + $0x8] sm:$0xff]
      %v150 = vld [vmem:[%s138 + $0x10] sm:$0xff]
      %v151 = vld [vmem:[%s138 + $0x18] sm:$0xff]
      %v152 = vld [vmem:[%s138 + $0x20] sm:$0xff]
      %v153 = vld [vmem:[%s138 + $0x28] sm:$0xff]
      %v154 = vld [vmem:[%s138 + $0x30] sm:$0xff]
      %v155 = vld [vmem:[%s138 + $0x38] sm:$0xff]
      %vm156 = vcmask 261120
      %v158 = vsel %vm156, %v144, 0
      %v161 = vsel %vm156, %v145, 0
      %v164 = vsel %vm156, %v146, 0
      %v167 = vsel %vm156, %v147, 0
      %169 = vmatpush.msra.mxu0 0.0
      %170 = vmatpush.msra.mxu0 0.0
      %171 = vmatpush.msra.mxu0 0.0
      %172 = vmatpush.msra.mxu0 0.0
      %173 = vmatpush.msra.mxu0 0.0
      %174 = vmatpush.msra.mxu0 0.0
      %175 = vmatpush.msra.mxu0 0.0
      %176 = vmatpush.msra.mxu0 0.0
      %177 = vmatpush.msra.mxu0 0.0
      %178 = vmatpush.msra.mxu0 0.0
      %179 = vmatpush.msra.mxu0 0.0
      %180 = vmatpush.msra.mxu0 0.0
      %181 = vmatpush.msra.mxu0 %v154
      %182 = vmatpush.msra.mxu0 %v152
      %183 = vmatpush.msra.mxu0 %v150
      %184 = vmatpush.msra.mxu0 %v148
      %185 = vmatmul.f32.gmra.mxu0 %v158
      %v186 = vpop.f32.mrf.mxu0
      %v187 = vadd.f32 0.0, %v186
      %188 = vmatmul.f32.gmra.mxu0 %v161
      %v189 = vpop.f32.mrf.mxu0
      %v190 = vadd.f32 0.0, %v189
      %191 = vmatmul.f32.gmra.mxu0 %v164
      %v192 = vpop.f32.mrf.mxu0
      %v193 = vadd.f32 0.0, %v192
      %194 = vmatmul.f32.gmra.mxu0 %v167
      %v195 = vpop.f32.mrf.mxu0
      %v196 = vadd.f32 0.0, %v195
      %197 = vdwg.mxu0
      %198 = vmatpush.msra.mxu0 0.0
      %199 = vmatpush.msra.mxu0 0.0
      %200 = vmatpush.msra.mxu0 0.0
      %201 = vmatpush.msra.mxu0 0.0
      %202 = vmatpush.msra.mxu0 0.0
      %203 = vmatpush.msra.mxu0 0.0
      %204 = vmatpush.msra.mxu0 0.0
      %205 = vmatpush.msra.mxu0 0.0
      %206 = vmatpush.msra.mxu0 0.0
      %207 = vmatpush.msra.mxu0 0.0
      %208 = vmatpush.msra.mxu0 0.0
      %209 = vmatpush.msra.mxu0 0.0
      %210 = vmatpush.msra.mxu0 %v155
      %211 = vmatpush.msra.mxu0 %v153
      %212 = vmatpush.msra.mxu0 %v151
      %213 = vmatpush.msra.mxu0 %v149
      %214 = vmatmul.f32.gmra.mxu0 %v158
      %v215 = vpop.f32.mrf.mxu0
      %v216 = vadd.f32 0.0, %v215
      %217 = vmatmul.f32.gmra.mxu0 %v161
      %v218 = vpop.f32.mrf.mxu0
      %v219 = vadd.f32 0.0, %v218
      %220 = vmatmul.f32.gmra.mxu0 %v164
      %v221 = vpop.f32.mrf.mxu0
      %v222 = vadd.f32 0.0, %v221
      %223 = vmatmul.f32.gmra.mxu0 %v167
      %v224 = vpop.f32.mrf.mxu0
      %v225 = vadd.f32 0.0, %v224
      %226 = vdwg.mxu0
      %v227 = vmax.f32 %v187, 0.0
      %v228 = vmax.f32 %v216, 0.0
      %v229 = vmax.f32 %v190, 0.0
      %v230 = vmax.f32 %v219, 0.0
      %v231 = vmax.f32 %v193, 0.0
      %v232 = vmax.f32 %v222, 0.0
      %v233 = vmax.f32 %v196, 0.0
      %v234 = vmax.f32 %v225, 0.0
      %235 = vst [vmem:[%s143] sm:$0xff] %v227
      %236 = vst [vmem:[%s143 + $0x8] sm:$0xff] %v228
      %237 = vst [vmem:[%s143 + $0x10] sm:$0xff] %v229
      %238 = vst [vmem:[%s143 + $0x18] sm:$0xff] %v230
      %239 = vst [vmem:[%s143 + $0x20] sm:$0xff] %v231
      %240 = vst [vmem:[%s143 + $0x28] sm:$0xff] %v232
      %241 = vst [vmem:[%s143 + $0x30] sm:$0xff] %v233
      %242 = vst [vmem:[%s143 + $0x38] sm:$0xff] %v234
      %p243 = scmp.lt.s32.totalorder %s13, 1
      %s244 = scalar_select %p243, %s13, 1
      %s245 = smul.addr %s244, 8
      %s246 = smul.addr %s245, 8
      %s247 = scalar_lea.vmem %s2, %s246
      // Predicated region
      $region29: #{batched_forward.1} parent=27 // pred_check
        %p248 = pneg %p78
      $region30: #{batched_forward.1} parent=27 // pred_check_branch
        %250 = sbr.rel (%p248) target = $region32
      $region31: #{batched_forward.1} parent=27 // pred_region
        _
      $region32: #{batched_forward.1} parent=27 // pred_fallthru
        _
    $region28: #{batched_forward.1} parent=5 // pred_fallthru
      _
    %p251 = scmp.le.s32.totalorder 2, %s8
    // Predicated region
    $region33: #{batched_forward.1} parent=5 // pred_check
      %p252 = pneg %p251
    $region34: #{batched_forward.1} parent=5 // pred_check_branch
      %254 = sbr.rel (%p252) target = $region36
    $region35: #{batched_forward.1} parent=5 // pred_region
      %s255 = ssub.s32 %s8, 2
      // Predicated region
      $region37: #{batched_forward.1} parent=35 // pred_check
        %p256 = pneg %p84
      $region38: #{batched_forward.1} parent=35 // pred_check_branch
        %258 = sbr.rel (%p256) target = $region40
      $region39: #{batched_forward.1} parent=35 // pred_region
        %p259 = scmp.lt.s32.totalorder %s14, 1
        %s260 = scalar_select %p259, %s14, 1
        %s261 = smul.addr %s260, 8
        %s262 = smul.addr %s261, 8
        %s263 = scalar_lea.vmem %s2, %s262
      $region40: #{batched_forward.1} parent=35 // pred_fallthru
        _
    $region36: #{batched_forward.1} parent=5 // pred_fallthru
      _
  $region6: #{batched_forward.1} parent=0 // loop_footer
    %s12 = sadd.s32 1, %s8
  $region7: #{batched_forward.1} parent=0 // loop_footer_branch
    %7 = sbr.rel target = $region3
  $region8: #{batched_forward.1} parent=0 // loop_exit
    _

</llo_original>
